<compile_context>
chip_gen: v5e
topology: v5e:2x2
jax: 0.10.0
libtpu: 0.0.40
codegen_flags: <defaults>
</compile_context>

<pallas_src>
import math

import jax
import jax.numpy as jnp
from jax.experimental import pallas as pl
from jax.experimental.pallas import tpu as pltpu


def _round_up(x: int, m: int) -> int:
    return ((x + m - 1) // m) * m


def make_pe(d_model: int, max_len: int = 4096, dtype=jnp.float32) -> jnp.ndarray:
    """Deterministic positional-encoding buffer (matches torch __init__)."""
    assert d_model % 2 == 0, "d_model must be even (matches the torch pe layout)"
    position = jnp.arange(max_len, dtype=jnp.float32)[:, None]            # [L, 1]
    div_term = jnp.exp(
        jnp.arange(0, d_model, 2, dtype=jnp.float32) * (-math.log(10000.0) / d_model)
    )                                                                     # [D/2]
    pe = jnp.zeros((max_len, 1, d_model), dtype=jnp.float32)
    pe = pe.at[:, 0, 0::2].set(jnp.sin(position * div_term))
    pe = pe.at[:, 0, 1::2].set(jnp.cos(position * div_term))
    return pe.astype(dtype)   # build in the model dtype (e.g. bf16) to halve pe traffic


def pe_add_kernel(x_ref, pe_ref, o_ref):
    # x_ref: (ts, tb, D), pe_ref: (ts, 1, D) -> broadcast add over the batch axis.
    # Explicit cast so mixed dtypes (e.g. bf16 x + f32 pe) store correctly.
    o_ref[...] = (x_ref[...] + pe_ref[...]).astype(o_ref.dtype)


def _choose_tiles(S: int, B: int, D: int, itemsize: int,
                  target_block_bytes: int = 2 * 1024 * 1024) -> tuple[int, int]:
    """Pick (seq_tile, batch_tile) so one *padded* x block is ~<= 2 MiB.

    Double-buffered x + out + pe blocks then stay under the scoped-VMEM default
    on every generation (16 MiB v5e, 32 MiB v6e/v7x).  Padding of the trailing
    (batch, d_model) dims to (sublane, lane) tiles is included in the budget.
    """
    sub = max(8, 32 // itemsize)              # sublane packing (8 f32, 16 bf16, ...)
    d_pad = _round_up(D, 128)                 # lane padding

    # One sequence row's padded footprint; tile the batch axis if it is too big.
    tb = B
    slab = _round_up(tb, sub) * d_pad * itemsize
    if slab > target_block_bytes and B > sub:
        tb = max(sub, (target_block_bytes // (d_pad * itemsize)) // sub * sub)
        tb = min(tb, B)
        slab = _round_up(tb, sub) * d_pad * itemsize

    ts = max(1, target_block_bytes // slab)
    ts = min(ts, S)

    # Megacore / pipelining: ensure >= 2 grid steps along the sequence axis
    # whenever it can be split into two >= 8-row tiles (v7x has 2 TensorCores;
    # a single-step grid gets neither sharding nor DMA double-buffering).
    if ts == S and S >= 16:
        ts = _round_up(pl.cdiv(S, 2), 8)

    return int(ts), int(tb)


@jax.jit
def positional_encoding(x: jnp.ndarray, pe: jnp.ndarray) -> jnp.ndarray:
    """x: [S, B, D]; pe: [max_len, 1, D] with max_len >= S. Returns x + pe[:S]."""
    S, B, D = x.shape
    max_len = pe.shape[0]
    assert S <= max_len, f"seq_len {S} exceeds pe max_len {max_len}"
    assert pe.shape == (max_len, 1, D), f"bad pe shape {pe.shape}"

    itemsize = jnp.dtype(x.dtype).itemsize
    ts, tb = _choose_tiles(S, B, D, itemsize)
    grid = (pl.cdiv(S, ts), pl.cdiv(B, tb))

    cost = pl.CostEstimate(
        flops=S * B * D,
        transcendentals=0,
        bytes_accessed=2 * S * B * D * itemsize + S * D * jnp.dtype(pe.dtype).itemsize,
    )

    return pl.pallas_call(
        pe_add_kernel,
        out_shape=jax.ShapeDtypeStruct((S, B, D), x.dtype),
        grid=grid,
        in_specs=[
            # x: tiled along (seq, batch); D is the full (lane) dim.
            pl.BlockSpec((ts, tb, D), lambda i, j: (i, j, 0)),
            # pe: full buffer passed in; rows picked by the index_map (no
            # wrapper-side pe[:S] slice / extra HBM copy).
            pl.BlockSpec((ts, 1, D), lambda i, j: (i, 0, 0)),
        ],
        out_specs=pl.BlockSpec((ts, tb, D), lambda i, j: (i, j, 0)),
        # NOTE: no input_output_aliases here — this wrapper does not donate x,
        # and an unbacked alias makes XLA insert a defensive full copy of x.
        # Re-enable input_output_aliases={0: 0} only at a call site that
        # actually donates x's buffer.
        compiler_params=pltpu.CompilerParams(
            dimension_semantics=("parallel", "parallel"),
        ),
        cost_estimate=cost,
    )(x, pe)


if __name__ == "__main__":
    d_model = 32
    max_len = 64
    seq_len = 8
    batch = 2

    key = jax.random.PRNGKey(0)
    x = jax.random.normal(key, (seq_len, batch, d_model), dtype=jnp.float32)
    pe = make_pe(d_model, max_len, dtype=x.dtype)

    # Pure-JAX reference.
    ref = x + pe[:seq_len]

    out = jax.block_until_ready(positional_encoding(x, pe))

    assert out.shape == (seq_len, batch, d_model)
    assert jnp.allclose(out, ref, atol=1e-6), "mismatch vs reference"

    print("KERNEL_OK")
</pallas_src>

<mosaic_0001>
module attributes {stable_mosaic.version = 11 : i64} {
  func.func @pe_add_kernel(%arg0: i32, %arg1: i32, %arg2: memref<8x2x32xf32, #tpu.memory_space<vmem>>, %arg3: memref<8x1x32xf32, #tpu.memory_space<vmem>>, %arg4: memref<8x2x32xf32, #tpu.memory_space<vmem>>) attributes {dimension_semantics = [#tpu.dimension_semantics<parallel>, #tpu.dimension_semantics<parallel>], iteration_bounds = array<i64: 1, 1>, scalar_prefetch = 0 : i64, scratch_operands = 0 : i64, tpu.core_type = #tpu.core_type<tc>, window_params = [{transform_indices = @transform_0, window_bounds = array<i64: 8, 2, 32>}, {transform_indices = @transform_1, window_bounds = array<i64: 8, 1, 32>}, {transform_indices = @transform_2, window_bounds = array<i64: 8, 2, 32>}]} {
    %c0 = arith.constant 0 : index
    %c0_0 = arith.constant 0 : index
    %c0_1 = arith.constant 0 : index
    %0 = vector.load %arg2[%c0, %c0_0, %c0_1] : memref<8x2x32xf32, #tpu.memory_space<vmem>>, vector<8x2x32xf32>
    %c0_2 = arith.constant 0 : index
    %c0_3 = arith.constant 0 : index
    %c0_4 = arith.constant 0 : index
    %1 = vector.load %arg3[%c0_2, %c0_3, %c0_4] : memref<8x1x32xf32, #tpu.memory_space<vmem>>, vector<8x1x32xf32>
    %2 = vector.broadcast %1 : vector<8x1x32xf32> to vector<8x2x32xf32>
    %3 = arith.addf %0, %2 : vector<8x2x32xf32>
    %c0_5 = arith.constant 0 : index
    %c0_6 = arith.constant 0 : index
    %c0_7 = arith.constant 0 : index
    %4 = vector.load %arg4[%c0_5, %c0_6, %c0_7] : memref<8x2x32xf32, #tpu.memory_space<vmem>>, vector<8x2x32xf32>
    tpu.vector_store %arg4[%c0_5, %c0_6, %c0_7], %3 {strides = array<i32>} : memref<8x2x32xf32, #tpu.memory_space<vmem>>, vector<8x2x32xf32>,
    return
  }
  func.func @transform_0(%arg0: i32, %arg1: i32) -> (i32, i32, i32) {
    %c0_i32 = arith.constant 0 : i32
    %c0_i32_0 = arith.constant 0 : i32
    return %arg0, %arg1, %c0_i32 : i32, i32, i32
  }
  func.func @transform_1(%arg0: i32, %arg1: i32) -> (i32, i32, i32) {
    %c0_i32 = arith.constant 0 : i32
    %c0_i32_0 = arith.constant 0 : i32
    %c0_i32_1 = arith.constant 0 : i32
    return %arg0, %c0_i32, %c0_i32_0 : i32, i32, i32
  }
  func.func @transform_2(%arg0: i32, %arg1: i32) -> (i32, i32, i32) {
    %c0_i32 = arith.constant 0 : i32
    %c0_i32_0 = arith.constant 0 : i32
    return %arg0, %arg1, %c0_i32 : i32, i32, i32
  }
}

</mosaic_0001>

<llo_original>
// kernel: positional_encoding.1
$region0: #{positional_encoding.1}
  #allocation0 [shape = 'u32[]', space=smem, size = 0x4, offset = 0x4, fixed_abs, tag = 'smem constant byte address 0x4 - core index']
  #allocation1 [shape = 'u32[72,128]{1,0:T(1,128)}', space=vmem, size = 0x9000, scoped, tag = 'internal scratch']
  %s0 = inlined_call_operand.vmem [shape: f32[8,2,32], index: 0, kind: input, shape index: {}]
  %s1 = inlined_call_operand.vmem [shape: f32[64,1,32], index: 1, kind: input, shape index: {}]
  %s2 = inlined_call_operand.hbm [shape: f32[8,2,32], index: 2, kind: output, shape index: {}]
  %s3 = sld [smem:[#allocation0]]
  $region18: #{positional_encoding.1} parent=0
    _
  %s5 = ssub.s32 1, %s3
  %s6 = scalar_select 0, %s5, %s3
  $region1: #{positional_encoding.1} parent=0
    #allocation2 [shape = 'u8[8192]{0}', space=vmem, size = 0x2000, scoped, tag = 'output window, operand 0, single buffered']
    #allocation3 [shape = 's32[1]{0}', space=sflag, size = 0x4, scoped, tag = 'scoped memory for positional_encoding.1']
    %7 = vsyncpa [#allocation3], 0
    // Predicated region
    $region2: #{positional_encoding.1} parent=1 // pred_check
      _
    $region3: #{positional_encoding.1} parent=1 // pred_check_branch
      %9 = sbr.rel (0) target = $region5
    $region4: #{positional_encoding.1} parent=1 // pred_region
      _
    $region5: #{positional_encoding.1} parent=1 // pred_fallthru
      _
    // Predicated region
    $region6: #{positional_encoding.1} parent=1 // pred_check
      _
    $region7: #{positional_encoding.1} parent=1 // pred_check_branch
      %11 = sbr.rel (0) target = $region9
    $region8: #{positional_encoding.1} parent=1 // pred_region
      _
    $region9: #{positional_encoding.1} parent=1 // pred_fallthru
      _
    %v12 = vld [vmem:[%s0] sm:$0x3]
    %v13 = vld [vmem:[%s0 + $0x2] sm:$0x3]
    %v14 = vld [vmem:[%s0 + $0x4] sm:$0x3]
    %v15 = vld [vmem:[%s0 + $0x6] sm:$0x3]
    %v16 = vld [vmem:[%s0 + $0x8] sm:$0x3]
    %v17 = vld [vmem:[%s0 + $0xa] sm:$0x3]
    %v18 = vld [vmem:[%s0 + $0xc] sm:$0x3]
    %v19 = vld [vmem:[%s0 + $0xe] sm:$0x3]
    %v20 = vld [vmem:[%s1] sm:$0x1]
    %v21 = vld [vmem:[%s1 + $0x1] sm:$0x1]
    %v22 = vld [vmem:[%s1 + $0x2] sm:$0x1]
    %v23 = vld [vmem:[%s1 + $0x3] sm:$0x1]
    %v24 = vld [vmem:[%s1 + $0x4] sm:$0x1]
    %v25 = vld [vmem:[%s1 + $0x5] sm:$0x1]
    %v26 = vld [vmem:[%s1 + $0x6] sm:$0x1]
    %v27 = vld [vmem:[%s1 + $0x7] sm:$0x1]
    %v36 = vperm.slane %v20, 0
    %v37 = vperm.slane %v21, 0
    %v38 = vperm.slane %v22, 0
    %v39 = vperm.slane %v23, 0
    %v40 = vperm.slane %v24, 0
    %v41 = vperm.slane %v25, 0
    %v42 = vperm.slane %v26, 0
    %v43 = vperm.slane %v27, 0
    %v52 = vadd.f32 %v12, %v36
    %v53 = vadd.f32 %v13, %v37
    %v54 = vadd.f32 %v14, %v38
    %v55 = vadd.f32 %v15, %v39
    %v56 = vadd.f32 %v16, %v40
    %v57 = vadd.f32 %v17, %v41
    %v58 = vadd.f32 %v18, %v42
    %v59 = vadd.f32 %v19, %v43
    %vm60 = vcmask 254976
    %61 = vst.msk [vmem:[#allocation2] sm:$0x3] %vm60, %v52
    %62 = vst.msk [vmem:[#allocation2 + $0x2] sm:$0x3] %vm60, %v53
    %63 = vst.msk [vmem:[#allocation2 + $0x4] sm:$0x3] %vm60, %v54
    %64 = vst.msk [vmem:[#allocation2 + $0x6] sm:$0x3] %vm60, %v55
    %65 = vst.msk [vmem:[#allocation2 + $0x8] sm:$0x3] %vm60, %v56
    %66 = vst.msk [vmem:[#allocation2 + $0xa] sm:$0x3] %vm60, %v57
    %67 = vst.msk [vmem:[#allocation2 + $0xc] sm:$0x3] %vm60, %v58
    %68 = vst.msk [vmem:[#allocation2 + $0xe] sm:$0x3] %vm60, %v59
    // Predicated region
    $region10: #{positional_encoding.1} parent=1 // pred_check
      _
    $region11: #{positional_encoding.1} parent=1 // pred_check_branch
      %70 = sbr.rel (0) target = $region13
    $region12: #{positional_encoding.1} parent=1 // pred_region
      %72 = vsyncadd [#allocation3], 0
      %s73 = sshll.u32 [#allocation2], 4
      %s74 = int_to_ptr.vmem [resolvable:$true] %s73
      %s75 = sshll.u32 %s2, 4
      %s76 = int_to_ptr.hbm [resolvable:$true] %s75
      %81 = dma.vmem_to_hbm [thread:$0]  %s74, 256, %s76, [#allocation3], 32, 32, 2
    $region13: #{positional_encoding.1} parent=1 // pred_fallthru
      _
    // Predicated region
    $region14: #{positional_encoding.1} parent=1 // pred_check
      _
    $region15: #{positional_encoding.1} parent=1 // pred_check_branch
      %83 = sbr.rel (0) target = $region17
    $region16: #{positional_encoding.1} parent=1 // pred_region
      %85 = dma.done [#allocation3], 256
    $region17: #{positional_encoding.1} parent=1 // pred_fallthru
      _
    %86 = vsyncpa [#allocation3], 1

</llo_original>
